<compile_context>
chip_gen: v7x
topology: tpu7x:2x2x1
jax: 0.10.0
libtpu: 0.0.40
codegen_flags: <defaults>
</compile_context>

<pallas_src>
import functools

import jax
import jax.numpy as jnp
from jax import lax
from jax.experimental import pallas as pl
from jax.experimental.pallas import tpu as pltpu


def _effective_weights(w, alpha):
    """w * |w|^(alpha-1); cheap VALU lowering for small integer alpha."""
    a = float(alpha)
    if a == 1.0:
        return w
    aw = jnp.abs(w)
    if a == round(a) and 2.0 <= a <= 8.0:
        p = aw
        for _ in range(int(round(a)) - 2):
            p = p * aw
        return w * p
    # Arbitrary float alpha: falls back to exp/log on the EUP.
    return w * jnp.power(aw, a - 1.0)


# Contract the In axis of x ([B, In]) with the In axis of w ([Out, In]).
_CONTRACT_IN = (((1,), (1,)), ((), ()))


def _pp_linear_small_kernel(x_ref, w_ref, *rest, alpha, masked):
    """Single-block path: whole operands resident in VMEM, one invocation."""
    if masked:
        m_ref, b_ref, o_ref = rest
    else:
        b_ref, o_ref = rest
    eff_w = _effective_weights(w_ref[...], alpha)
    if masked:
        eff_w = eff_w * m_ref[...]
    acc = lax.dot_general(
        x_ref[...], eff_w.astype(x_ref.dtype),
        dimension_numbers=_CONTRACT_IN,
        preferred_element_type=jnp.float32)
    o_ref[...] = (acc + b_ref[...].astype(jnp.float32)).astype(o_ref.dtype)


def _pp_linear_tiled_kernel(x_ref, w_ref, *rest, alpha, masked):
    """Tiled path: grid = (B/tm, Out/tn, In/tk), k is the innermost reduction."""
    if masked:
        m_ref, b_ref, o_ref, acc_ref = rest
    else:
        b_ref, o_ref, acc_ref = rest

    k = pl.program_id(2)

    @pl.when(k == 0)
    def _init():
        acc_ref[...] = jnp.zeros_like(acc_ref)

    # The weight transform is recomputed per batch tile; with the integer-alpha
    # VALU path this is hidden under the MXU + DMA.
    # TODO(synk): for very large B/tm, hoist eff_w into a prologue pass.
    eff_w = _effective_weights(w_ref[...], alpha)
    if masked:
        eff_w = eff_w * m_ref[...]

    acc_ref[...] += lax.dot_general(
        x_ref[...], eff_w.astype(x_ref.dtype),
        dimension_numbers=_CONTRACT_IN,
        preferred_element_type=jnp.float32)

    @pl.when(k == pl.num_programs(2) - 1)
    def _finalize():
        o_ref[...] = (acc_ref[...] + b_ref[...].astype(jnp.float32)).astype(
            o_ref.dtype)


def _pick_tile(dim, prefs):
    """Largest preferred tile that evenly divides dim, else the full extent."""
    for p in prefs:
        if dim >= p and dim % p == 0:
            return p
    return dim  # full-extent block is always a legal block shape


def powerprop_linear(x, w, b, alpha, mask=None):
    """Pallas implementation of PowerPropLinear.forward."""
    B, In = x.shape
    Out, In_w = w.shape
    assert In == In_w, (In, In_w)
    assert b.shape == (Out,)
    if mask is not None:
        assert mask.shape == w.shape
    masked = mask is not None
    b2 = b.reshape(1, Out)

    # Lane-dense (multiple-of-128) Out / In tiles; MXU-shaped k tile.
    tm = _pick_tile(B, (256, 128, 64, 32, 16, 8))
    tn = _pick_tile(Out, (256, 128))
    tk = _pick_tile(In, (512, 256, 128))
    grid = (B // tm, Out // tn, In // tk)
    n_steps = grid[0] * grid[1] * grid[2]

    if n_steps == 1:
        # Small-shape fast path: no grid, whole arrays in VMEM.
        kernel = functools.partial(
            _pp_linear_small_kernel, alpha=float(alpha), masked=masked)
        args = (x, w, mask, b2) if masked else (x, w, b2)
        return pl.pallas_call(
            kernel,
            out_shape=jax.ShapeDtypeStruct((B, Out), x.dtype),
        )(*args)

    kernel = functools.partial(
        _pp_linear_tiled_kernel, alpha=float(alpha), masked=masked)
    in_specs = [
        pl.BlockSpec((tm, tk), lambda i, j, k: (i, k)),      # x
        pl.BlockSpec((tn, tk), lambda i, j, k: (j, k)),      # w
    ]
    args = [x, w]
    if masked:
        in_specs.append(pl.BlockSpec((tn, tk), lambda i, j, k: (j, k)))  # mask
        args.append(mask)
    in_specs.append(pl.BlockSpec((1, tn), lambda i, j, k: (0, j)))       # bias
    args.append(b2)

    return pl.pallas_call(
        kernel,
        out_shape=jax.ShapeDtypeStruct((B, Out), x.dtype),
        grid_spec=pltpu.PrefetchScalarGridSpec(
            num_scalar_prefetch=0,
            grid=grid,
            in_specs=in_specs,
            out_specs=pl.BlockSpec((tm, tn), lambda i, j, k: (i, j)),
            scratch_shapes=[pltpu.VMEM((tm, tn), jnp.float32)],
        ),
        compiler_params=pltpu.CompilerParams(
            # batch / out tiles are independent -> shardable across v7x's
            # 2 TensorCores; k is the reduction into the resident accumulator.
            dimension_semantics=("parallel", "parallel", "arbitrary"),
            # Explicit scoped-VMEM budget with headroom (safe on v5e/v6e/v7x):
            # tiles above are ~4 MiB double-buffered, well under 32 MiB.
            vmem_limit_bytes=32 << 20,
        ),
    )(*args)


def _reference(x, w, b, alpha, mask=None):
    eff_w = w * jnp.power(jnp.abs(w), float(alpha) - 1.0)
    if mask is not None:
        eff_w = eff_w * mask
    return jnp.dot(x, eff_w.T, precision=lax.Precision.HIGHEST) + b


if __name__ == "__main__":
    key = jax.random.PRNGKey(0)
    k1, k2, k3, k4, k5, k6, k7 = jax.random.split(key, 7)

    # --- small path (module-sized toy shapes) --------------------------------
    alpha = 2.0
    batch, in_features, out_features = 8, 32, 64
    x = jax.random.uniform(k1, (batch, in_features), dtype=jnp.float32)
    w = jax.random.uniform(k2, (out_features, in_features), dtype=jnp.float32)
    b = jax.random.uniform(k3, (out_features,), dtype=jnp.float32)

    out = jax.block_until_ready(powerprop_linear(x, w, b, alpha))
    ref = _reference(x, w, b, alpha)
    assert out.shape == (batch, out_features)
    assert jnp.allclose(out, ref, atol=1e-4, rtol=1e-4), "small path mismatch"

    # masked variant (pruning mask, as in powerpropagation)
    mask = (jax.random.uniform(k4, w.shape) > 0.5).astype(w.dtype)
    out_m = jax.block_until_ready(powerprop_linear(x, w, b, alpha, mask))
    ref_m = _reference(x, w, b, alpha, mask)
    assert jnp.allclose(out_m, ref_m, atol=1e-4, rtol=1e-4), "mask path mismatch"

    # --- tiled path (128/8-aligned layer, exercises the k-reduction grid) ----
    B2, In2, Out2 = 256, 1024, 512
    x2 = jax.random.uniform(k5, (B2, In2), dtype=jnp.float32)
    w2 = jax.random.uniform(k6, (Out2, In2), dtype=jnp.float32) * 0.1
    bias2 = jax.random.uniform(k7, (Out2,), dtype=jnp.float32)

    out2 = jax.block_until_ready(powerprop_linear(x2, w2, bias2, alpha))
    ref2 = _reference(x2, w2, bias2, alpha)
    assert jnp.allclose(out2, ref2, atol=1e-3, rtol=1e-3), "tiled path mismatch"

    print("KERNEL_OK")
</pallas_src>

<mosaic_0001>
module attributes {stable_mosaic.version = 11 : i64} {
  func.func @_pp_linear_small_kernel(%arg0: memref<8x32xf32, #tpu.memory_space<vmem>>, %arg1: memref<64x32xf32, #tpu.memory_space<vmem>>, %arg2: memref<1x64xf32, #tpu.memory_space<vmem>>, %arg3: memref<8x64xf32, #tpu.memory_space<vmem>>) attributes {dimension_semantics = [], scalar_prefetch = 0 : i64, scratch_operands = 0 : i64, tpu.core_type = #tpu.core_type<tc>} {
    %c0 = arith.constant 0 : index
    %c0_0 = arith.constant 0 : index
    %0 = vector.load %arg1[%c0, %c0_0] : memref<64x32xf32, #tpu.memory_space<vmem>>, vector<64x32xf32>
    %1 = math.absf %0 : vector<64x32xf32>
    %2 = arith.mulf %0, %1 : vector<64x32xf32>
    %c0_1 = arith.constant 0 : index
    %c0_2 = arith.constant 0 : index
    %3 = vector.load %arg0[%c0_1, %c0_2] : memref<8x32xf32, #tpu.memory_space<vmem>>, vector<8x32xf32>
    %cst = arith.constant dense<0.000000e+00> : vector<8x64xf32>
    %4 = tpu.matmul %3, %2, %cst {dimension_numbers = #tpu.dot_dimension_numbers<[1], [1], [0], [0], [0, 0, 1, 0], [], []>} : vector<8x32xf32>, vector<64x32xf32>, vector<8x64xf32> -> vector<8x64xf32>
    %c0_3 = arith.constant 0 : index
    %c0_4 = arith.constant 0 : index
    %5 = vector.load %arg2[%c0_3, %c0_4] : memref<1x64xf32, #tpu.memory_space<vmem>>, vector<1x64xf32>
    %6 = vector.broadcast %5 : vector<1x64xf32> to vector<8x64xf32>
    %7 = arith.addf %4, %6 : vector<8x64xf32>
    %c0_5 = arith.constant 0 : index
    %c0_6 = arith.constant 0 : index
    %8 = vector.load %arg3[%c0_5, %c0_6] : memref<8x64xf32, #tpu.memory_space<vmem>>, vector<8x64xf32>
    tpu.vector_store %arg3[%c0_5, %c0_6], %7 {strides = array<i32>} : memref<8x64xf32, #tpu.memory_space<vmem>>, vector<8x64xf32>,
    return
  }
}

</mosaic_0001>

<llo_original>
// kernel: tpu_custom_call.1
$region0: #{tpu_custom_call.1}
  #allocation0 [shape = 'u32[]', space=smem, size = 0x4, offset = 0x4, fixed_abs, tag = 'smem constant byte address 0x4 - core index']
  #allocation1 [shape = 'u32[144,128]{1,0:T(1,128)}', space=vmem, size = 0x12000, scoped, tag = 'internal scratch']
  %s0 = inlined_call_operand.vmem [shape: f32[8,32], index: 0, kind: input, shape index: {}]
  %s1 = inlined_call_operand.vmem [shape: f32[64,32], index: 1, kind: input, shape index: {}]
  %s2 = inlined_call_operand.vmem [shape: f32[1,64], index: 2, kind: input, shape index: {}]
  %s3 = inlined_call_operand.hbm [shape: f32[8,64], index: 3, kind: output, shape index: {}]
  %s4 = sld [smem:[#allocation0]]
  $region22: #{tpu_custom_call.1} parent=0
    _
  %s6 = ssub.s32 1, %s4
  %s7 = scalar_select 0, %s6, %s4
  $region1: #{tpu_custom_call.1} parent=0
    #allocation2 [shape = 'u8[4096]{0}', space=vmem, size = 0x1000, scoped, tag = 'output window, operand 0, single buffered']
    #allocation3 [shape = 's32[1]{0}', space=sflag, size = 0x4, scoped, tag = 'scoped memory for tpu_custom_call.1']
    %8 = vsyncpa [#allocation3], 0
    // Predicated region
    $region2: #{tpu_custom_call.1} parent=1 // pred_check
      _
    $region3: #{tpu_custom_call.1} parent=1 // pred_check_branch
      %10 = sbr.rel (0) target = $region5
    $region4: #{tpu_custom_call.1} parent=1 // pred_region
      _
    $region5: #{tpu_custom_call.1} parent=1 // pred_fallthru
      _
    // Predicated region
    $region6: #{tpu_custom_call.1} parent=1 // pred_check
      _
    $region7: #{tpu_custom_call.1} parent=1 // pred_check_branch
      %12 = sbr.rel (0) target = $region9
    $region8: #{tpu_custom_call.1} parent=1 // pred_region
      _
    $region9: #{tpu_custom_call.1} parent=1 // pred_fallthru
      _
    // Predicated region
    $region10: #{tpu_custom_call.1} parent=1 // pred_check
      _
    $region11: #{tpu_custom_call.1} parent=1 // pred_check_branch
      %14 = sbr.rel (0) target = $region13
    $region12: #{tpu_custom_call.1} parent=1 // pred_region
      _
    $region13: #{tpu_custom_call.1} parent=1 // pred_fallthru
      _
    %v15 = vld [vmem:[%s1] sm:$0xff]
    %v16 = vld [vmem:[%s1 + $0x8] sm:$0xff]
    %v17 = vld [vmem:[%s1 + $0x10] sm:$0xff]
    %v18 = vld [vmem:[%s1 + $0x18] sm:$0xff]
    %v19 = vld [vmem:[%s1 + $0x20] sm:$0xff]
    %v20 = vld [vmem:[%s1 + $0x28] sm:$0xff]
    %v21 = vld [vmem:[%s1 + $0x30] sm:$0xff]
    %v22 = vld [vmem:[%s1 + $0x38] sm:$0xff]
    %v23 = vand.u32 2147483647, %v15
    %v24 = vand.u32 2147483647, %v16
    %v25 = vand.u32 2147483647, %v17
    %v26 = vand.u32 2147483647, %v18
    %v27 = vand.u32 2147483647, %v19
    %v28 = vand.u32 2147483647, %v20
    %v29 = vand.u32 2147483647, %v21
    %v30 = vand.u32 2147483647, %v22
    %v31 = vmul.f32 %v15, %v23
    %v32 = vmul.f32 %v16, %v24
    %v33 = vmul.f32 %v17, %v25
    %v34 = vmul.f32 %v18, %v26
    %v35 = vmul.f32 %v19, %v27
    %v36 = vmul.f32 %v20, %v28
    %v37 = vmul.f32 %v21, %v29
    %v38 = vmul.f32 %v22, %v30
    %v39 = vld [vmem:[%s0] sm:$0xff]
    %v40 = vld [vmem:[%s2] sm:$0x1]
    %v42 = vlaneseq
    %v43 = vshrl.u32 %v42, 7
    %v44 = vsub.s32 0, %v43
    %v45 = vrot.slane %v40, %v44
    %vm47 = vcmask 261120
    %v49 = vsel %vm47, %v39, 0
    %v52 = vsel %vm47, %v31, 0
    %v55 = vsel %vm47, %v32, 0
    %v58 = vsel %vm47, %v33, 0
    %v61 = vsel %vm47, %v34, 0
    %v64 = vsel %vm47, %v35, 0
    %v67 = vsel %vm47, %v36, 0
    %v70 = vsel %vm47, %v37, 0
    %v73 = vsel %vm47, %v38, 0
    %75 = vmatprep.subr.mxu0 0.0
    %76 = vmatpush1.xpose.msra.mxu0 %v52
    %77 = vmatprep.subr.mxu0 0.0
    %78 = vmatpush1.xpose.msra.mxu0 %v55
    %79 = vmatprep.subr.mxu0 0.0
    %80 = vmatpush1.xpose.msra.mxu0 %v58
    %81 = vmatprep.subr.mxu0 0.0
    %82 = vmatpush1.xpose.msra.mxu0 %v61
    %83 = vmatprep.subr.mxu0 0.0
    %84 = vmatpush1.xpose.msra.mxu0 %v64
    %85 = vmatprep.subr.mxu0 0.0
    %86 = vmatpush1.xpose.msra.mxu0 %v67
    %87 = vmatprep.subr.mxu0 0.0
    %88 = vmatpush1.xpose.msra.mxu0 %v70
    %89 = vmatprep.subr.mxu0 0.0
    %90 = vmatpush1.xpose.msra.mxu0 %v73
    %91 = vmatprep.subr.mxu0 0.0
    %92 = vmatpush1.xpose.msra.mxu0 0.0
    %93 = vmatprep.subr.mxu0 0.0
    %94 = vmatpush1.xpose.msra.mxu0 0.0
    %95 = vmatprep.subr.mxu0 0.0
    %96 = vmatpush1.xpose.msra.mxu0 0.0
    %97 = vmatprep.subr.mxu0 0.0
    %98 = vmatpush1.xpose.msra.mxu0 0.0
    %99 = vmatprep.subr.mxu0 0.0
    %100 = vmatpush1.xpose.msra.mxu0 0.0
    %101 = vmatprep.subr.mxu0 0.0
    %102 = vmatpush1.xpose.msra.mxu0 0.0
    %103 = vmatprep.subr.mxu0 0.0
    %104 = vmatpush1.xpose.msra.mxu0 0.0
    %105 = vmatprep.subr.mxu0 0.0
    %106 = vmatpush1.xpose.msra.mxu0 0.0
    %107 = vmatprep.subr.mxu0 0.0
    %108 = vmatpush1.xpose.msra.mxu0 0.0
    %109 = vmatprep.subr.mxu0 0.0
    %110 = vmatpush1.xpose.msra.mxu0 0.0
    %111 = vmatprep.subr.mxu0 0.0
    %112 = vmatpush1.xpose.msra.mxu0 0.0
    %113 = vmatprep.subr.mxu0 0.0
    %114 = vmatpush1.xpose.msra.mxu0 0.0
    %115 = vmatprep.subr.mxu0 0.0
    %116 = vmatpush1.xpose.msra.mxu0 0.0
    %117 = vmatprep.subr.mxu0 0.0
    %118 = vmatpush1.xpose.msra.mxu0 0.0
    %119 = vmatprep.subr.mxu0 0.0
    %120 = vmatpush1.xpose.msra.mxu0 0.0
    %121 = vmatprep.subr.mxu0 0.0
    %122 = vmatpush1.xpose.msra.mxu0 0.0
    %123 = vmatprep.subr.mxu0 0.0
    %124 = vmatpush1.xpose.msra.mxu0 0.0
    %125 = vmatprep.subr.mxu0 0.0
    %126 = vmatpush1.xpose.msra.mxu0 0.0
    %127 = vmatprep.subr.mxu0 0.0
    %128 = vmatpush1.xpose.msra.mxu0 0.0
    %129 = vmatprep.subr.mxu0 0.0
    %130 = vmatpush1.xpose.msra.mxu0 0.0
    %131 = vmatprep.subr.mxu0 0.0
    %132 = vmatpush1.xpose.msra.mxu0 0.0
    %133 = vmatprep.subr.mxu0 0.0
    %134 = vmatpush1.xpose.msra.mxu0 0.0
    %135 = vmatprep.subr.mxu0 0.0
    %136 = vmatpush1.xpose.msra.mxu0 0.0
    %137 = vmatprep.subr.mxu0 0.0
    %138 = vmatpush1.xpose.msra.mxu0 0.0
    %139 = vmatprep.mubr.f32.mxu0 0.0
    %140 = vmatmul.mubr.f32.gmra.mrb[0].mxu0 %v49
    %v141 = vpop.f32.mrb[0].mxu0
    %v142 = vadd.f32 %v45, %v141
    %v143 = vpop.f32.mrb[0].mxu0
    %144 = vdwg.mxu0
    %vm145 = vcmask 523264
    %146 = vst.msk [vmem:[#allocation2] sm:$0xff] %vm145, %v142
    // Predicated region
    $region14: #{tpu_custom_call.1} parent=1 // pred_check
      _
    $region15: #{tpu_custom_call.1} parent=1 // pred_check_branch
      %148 = sbr.rel (0) target = $region17
    $region16: #{tpu_custom_call.1} parent=1 // pred_region
      %s150 = ssub.s32 128, 128
      %151 = vsyncadd [#allocation3], %s150
      %s153 = sshll.u32 [#allocation2], 4
      %s154 = int_to_ptr.vmem [resolvable:$true] %s153
      %156 = dma.vmem_to_hbm [thread:$0]  %s154, 128, %s3, [#allocation3]
    $region17: #{tpu_custom_call.1} parent=1 // pred_fallthru
      _
    // Predicated region
    $region18: #{tpu_custom_call.1} parent=1 // pred_check
      _
    $region19: #{tpu_custom_call.1} parent=1 // pred_check_branch
      %158 = sbr.rel (0) target = $region21
    $region20: #{tpu_custom_call.1} parent=1 // pred_region
      %159 = dma.done [#allocation3], 128
    $region21: #{tpu_custom_call.1} parent=1 // pred_fallthru
      _
    %160 = vsyncpa [#allocation3], 1

</llo_original>
